<compile_context>
chip_gen: v7x
topology: tpu7x:2x2x1
jax: 0.10.0
libtpu: 0.0.40
codegen_flags: <defaults>
</compile_context>

<pallas_src>
import jax
import jax.numpy as jnp
from jax.experimental import pallas as pl
from jax.experimental.pallas import tpu as pltpu


def autoencoder_kernel(x_ref, w1_ref, b1_ref, w2_ref, b2_ref,
                       w3_ref, b3_ref, w4_ref, b4_ref, o_ref):
    """Fused 4-layer MLP autoencoder forward pass on one batch tile."""
    cdt = w1_ref.dtype  # matmul-input dtype (bf16); accumulation stays f32

    def linear(h, w_ref, b_ref):
        # f32 accumulation + f32 bias add (biases kept in f32).
        return jnp.dot(h, w_ref[...], preferred_element_type=jnp.float32) + b_ref[...]

    # Cast x inside the kernel: reads HBM once in its native dtype instead of
    # paying a wrapper cast pass (extra read+write) plus a bf16 re-read.
    x = x_ref[...].astype(cdt)

    # encoder
    h = jnp.maximum(linear(x, w1_ref, b1_ref), 0.0).astype(cdt)
    h = jnp.maximum(linear(h, w2_ref, b2_ref), 0.0).astype(cdt)

    # decoder
    h = jnp.maximum(linear(h, w3_ref, b3_ref), 0.0).astype(cdt)
    # Dropout(0.1): identity in eval mode.
    out = linear(h, w4_ref, b4_ref)

    o_ref[...] = out.astype(o_ref.dtype)


def _round_up(a, b):
    return (a + b - 1) // b * b


def prepare_params(params, io_dtype=jnp.bfloat16):
    """One-time weight/bias preparation (hoisted out of the forward call):
    weights -> bf16 matmul inputs, biases -> f32 (row vectors)."""
    w1, b1, w2, b2, w3, b3, w4, b4 = params
    return (w1.astype(io_dtype), b1.astype(jnp.float32),
            w2.astype(io_dtype), b2.astype(jnp.float32),
            w3.astype(io_dtype), b3.astype(jnp.float32),
            w4.astype(io_dtype), b4.astype(jnp.float32))


def _vmem_capacity_bytes():
    try:
        return int(pltpu.get_tpu_info().vmem_capacity_bytes)
    except Exception:
        return 64 << 20  # v7x-safe conservative fallback


def _choose_bm(B, n_dim, x_bytes, out_bytes, vmem_budget, bm_cap):
    """Pick a sublane-aligned batch tile that fits the VMEM budget, is capped
    (>=85% of HBM roofline already at 512 rows), and yields >= 2 grid steps
    when possible so both v7x TensorCores are used."""
    B_pad8 = _round_up(B, 8)
    # Per-row VMEM bytes: double-buffered in/out tiles + live intermediates
    # (bf16 copy of x, f32 result of the final dot, small hidden activations).
    per_row = n_dim * (2 * x_bytes + 2 * out_bytes + 2 + 4) + 512
    bm_budget = max(8, (vmem_budget // per_row) // 8 * 8)
    bm = max(8, min(bm_cap, bm_budget, B_pad8) // 8 * 8)
    # Guarantee >= 2 grid steps when the batch allows it (v7x megacore).
    if B_pad8 >= 16 and B_pad8 // bm < 2:
        bm = _round_up(pl.cdiv(B_pad8, 2), 8)
    return bm, B_pad8


def autoencoder_forward(x, prepared_params, *, bm_cap=512, out_dtype=jnp.bfloat16):
    """Run the fused autoencoder kernel, tiling over the batch dimension only.

    No feature-dim padding, no wrapper cast of x, no output slice on the fast
    path (B already a multiple of the chosen tile).  Note: output is bf16 by
    default (mixed-precision recipe); pass out_dtype=jnp.float32 if callers
    need f32 storage.
    """
    B, n_dim = x.shape
    w1, b1, w2, b2, w3, b3, w4, b4 = prepared_params

    x_bytes = jnp.dtype(x.dtype).itemsize
    out_bytes = jnp.dtype(out_dtype).itemsize

    vmem_cap = _vmem_capacity_bytes()
    vmem_budget = int(vmem_cap * 0.45)           # tiles; leave room for weights/scratch
    bm, B_pad8 = _choose_bm(B, n_dim, x_bytes, out_bytes, vmem_budget, bm_cap)

    # Pad batch rows only as far as the tile requires (<= bm-1 extra rows,
    # usually 0); never pad the feature dim.
    B_final = _round_up(B_pad8, bm)
    xp = x if B_final == B else jnp.pad(x, ((0, B_final - B), (0, 0)))

    grid = (B_final // bm,)
    full = lambda a: pl.BlockSpec(a.shape, lambda i: (0,) * a.ndim)  # resident weights

    out = pl.pallas_call(
        autoencoder_kernel,
        out_shape=jax.ShapeDtypeStruct((B_final, n_dim), out_dtype),
        grid_spec=pltpu.PrefetchScalarGridSpec(
            num_scalar_prefetch=0,
            grid=grid,
            in_specs=[
                pl.BlockSpec((bm, n_dim), lambda i: (i, 0)),   # x tile (full feature dim)
                full(w1), full(b1),
                full(w2), full(b2),
                full(w3), full(b3),
                full(w4), full(b4),
            ],
            out_specs=pl.BlockSpec((bm, n_dim), lambda i: (i, 0)),
        ),
        compiler_params=pltpu.CompilerParams(
            dimension_semantics=("parallel",),        # shard batch tiles across v7x TCs
            vmem_limit_bytes=int(vmem_cap * 0.75),    # raise scoped limit within physical
        ),
    )(xp, w1, b1, w2, b2, w3, b3, w4, b4)

    return out if B_final == B else out[:B]


def init_params(key, n_dim):
    """Deterministic PyTorch-style uniform(-1/sqrt(fan_in), 1/sqrt(fan_in)) init."""
    dims = [(n_dim, 32), (32, 16), (16, 32), (32, n_dim)]
    params = []
    for (fan_in, fan_out) in dims:
        key, kw, kb = jax.random.split(key, 3)
        bound = 1.0 / jnp.sqrt(fan_in)
        w = jax.random.uniform(kw, (fan_in, fan_out), jnp.float32, -bound, bound)
        b = jax.random.uniform(kb, (1, fan_out), jnp.float32, -bound, bound)
        params.extend([w, b])
    return tuple(params)


def reference_forward(x, params, io_dtype=jnp.bfloat16):
    """Pure-JAX reference matching the kernel's mixed-precision recipe."""
    w1, b1, w2, b2, w3, b3, w4, b4 = params

    def lin(h, w, b):
        return jnp.dot(h.astype(io_dtype), w.astype(io_dtype),
                       preferred_element_type=jnp.float32) + b.astype(jnp.float32)

    h = jnp.maximum(lin(x, w1, b1), 0.0)
    h = jnp.maximum(lin(h, w2, b2), 0.0)
    h = jnp.maximum(lin(h, w3, b3), 0.0)
    return lin(h, w4, b4)


if __name__ == "__main__":
    n_dim = 64
    batch = 16

    key = jax.random.PRNGKey(0)
    key, kx = jax.random.split(key)
    x = jax.random.normal(kx, (batch, n_dim), jnp.float32)
    params = init_params(key, n_dim)

    prepared = prepare_params(params)            # one-time weight cast (hoisted)
    out = autoencoder_forward(x, prepared)
    out = jax.block_until_ready(out)

    ref = reference_forward(x, params)
    assert out.shape == (batch, n_dim)
    assert jnp.allclose(out.astype(jnp.float32), ref, atol=2e-2, rtol=2e-2)
    print("KERNEL_OK")
</pallas_src>

<mosaic_0001>
module attributes {stable_mosaic.version = 11 : i64} {
  func.func @autoencoder_kernel(%arg0: i32, %arg1: memref<8x64xf32, #tpu.memory_space<vmem>>, %arg2: memref<64x32xbf16, #tpu.memory_space<vmem>>, %arg3: memref<1x32xf32, #tpu.memory_space<vmem>>, %arg4: memref<32x16xbf16, #tpu.memory_space<vmem>>, %arg5: memref<1x16xf32, #tpu.memory_space<vmem>>, %arg6: memref<16x32xbf16, #tpu.memory_space<vmem>>, %arg7: memref<1x32xf32, #tpu.memory_space<vmem>>, %arg8: memref<32x64xbf16, #tpu.memory_space<vmem>>, %arg9: memref<1x64xf32, #tpu.memory_space<vmem>>, %arg10: memref<8x64xbf16, #tpu.memory_space<vmem>>) attributes {dimension_semantics = [#tpu.dimension_semantics<parallel>], iteration_bounds = array<i64: 2>, scalar_prefetch = 0 : i64, scratch_operands = 0 : i64, tpu.core_type = #tpu.core_type<tc>, window_params = [{transform_indices = @transform_0, window_bounds = array<i64: 8, 64>}, {pipeline_mode = #tpu.pipeline_mode<synchronous>, transform_indices = @transform_1, window_bounds = array<i64: 64, 32>}, {pipeline_mode = #tpu.pipeline_mode<synchronous>, transform_indices = @transform_2, window_bounds = array<i64: 1, 32>}, {pipeline_mode = #tpu.pipeline_mode<synchronous>, transform_indices = @transform_3, window_bounds = array<i64: 32, 16>}, {pipeline_mode = #tpu.pipeline_mode<synchronous>, transform_indices = @transform_4, window_bounds = array<i64: 1, 16>}, {pipeline_mode = #tpu.pipeline_mode<synchronous>, transform_indices = @transform_5, window_bounds = array<i64: 16, 32>}, {pipeline_mode = #tpu.pipeline_mode<synchronous>, transform_indices = @transform_6, window_bounds = array<i64: 1, 32>}, {pipeline_mode = #tpu.pipeline_mode<synchronous>, transform_indices = @transform_7, window_bounds = array<i64: 32, 64>}, {pipeline_mode = #tpu.pipeline_mode<synchronous>, transform_indices = @transform_8, window_bounds = array<i64: 1, 64>}, {transform_indices = @transform_9, window_bounds = array<i64: 8, 64>}]} {
    %c0 = arith.constant 0 : index
    %c0_0 = arith.constant 0 : index
    %0 = vector.load %arg1[%c0, %c0_0] : memref<8x64xf32, #tpu.memory_space<vmem>>, vector<8x64xf32>
    %1 = arith.truncf %0 : vector<8x64xf32> to vector<8x64xbf16>
    %c0_1 = arith.constant 0 : index
    %c0_2 = arith.constant 0 : index
    %2 = vector.load %arg2[%c0_1, %c0_2] : memref<64x32xbf16, #tpu.memory_space<vmem>>, vector<64x32xbf16>
    %cst = arith.constant dense<0.000000e+00> : vector<8x32xf32>
    %3 = tpu.matmul %1, %2, %cst {dimension_numbers = #tpu.dot_dimension_numbers<[1], [0], [0], [1], [0, 0, 1, 1], [], []>} : vector<8x64xbf16>, vector<64x32xbf16>, vector<8x32xf32> -> vector<8x32xf32>
    %c0_3 = arith.constant 0 : index
    %c0_4 = arith.constant 0 : index
    %4 = vector.load %arg3[%c0_3, %c0_4] : memref<1x32xf32, #tpu.memory_space<vmem>>, vector<1x32xf32>
    %5 = vector.broadcast %4 : vector<1x32xf32> to vector<8x32xf32>
    %6 = arith.addf %3, %5 : vector<8x32xf32>
    %cst_5 = arith.constant 0.000000e+00 : f32
    %7 = vector.broadcast %cst_5 : f32 to vector<8x32xf32>
    %8 = arith.maximumf %6, %7 : vector<8x32xf32>
    %9 = arith.truncf %8 : vector<8x32xf32> to vector<8x32xbf16>
    %c0_6 = arith.constant 0 : index
    %c0_7 = arith.constant 0 : index
    %10 = vector.load %arg4[%c0_6, %c0_7] : memref<32x16xbf16, #tpu.memory_space<vmem>>, vector<32x16xbf16>
    %cst_8 = arith.constant dense<0.000000e+00> : vector<8x16xf32>
    %11 = tpu.matmul %9, %10, %cst_8 {dimension_numbers = #tpu.dot_dimension_numbers<[1], [0], [0], [1], [0, 0, 1, 1], [], []>} : vector<8x32xbf16>, vector<32x16xbf16>, vector<8x16xf32> -> vector<8x16xf32>
    %c0_9 = arith.constant 0 : index
    %c0_10 = arith.constant 0 : index
    %12 = vector.load %arg5[%c0_9, %c0_10] : memref<1x16xf32, #tpu.memory_space<vmem>>, vector<1x16xf32>
    %13 = vector.broadcast %12 : vector<1x16xf32> to vector<8x16xf32>
    %14 = arith.addf %11, %13 : vector<8x16xf32>
    %cst_11 = arith.constant 0.000000e+00 : f32
    %15 = vector.broadcast %cst_11 : f32 to vector<8x16xf32>
    %16 = arith.maximumf %14, %15 : vector<8x16xf32>
    %17 = arith.truncf %16 : vector<8x16xf32> to vector<8x16xbf16>
    %c0_12 = arith.constant 0 : index
    %c0_13 = arith.constant 0 : index
    %18 = vector.load %arg6[%c0_12, %c0_13] : memref<16x32xbf16, #tpu.memory_space<vmem>>, vector<16x32xbf16>
    %cst_14 = arith.constant dense<0.000000e+00> : vector<8x32xf32>
    %19 = tpu.matmul %17, %18, %cst_14 {dimension_numbers = #tpu.dot_dimension_numbers<[1], [0], [0], [1], [0, 0, 1, 1], [], []>} : vector<8x16xbf16>, vector<16x32xbf16>, vector<8x32xf32> -> vector<8x32xf32>
    %c0_15 = arith.constant 0 : index
    %c0_16 = arith.constant 0 : index
    %20 = vector.load %arg7[%c0_15, %c0_16] : memref<1x32xf32, #tpu.memory_space<vmem>>, vector<1x32xf32>
    %21 = vector.broadcast %20 : vector<1x32xf32> to vector<8x32xf32>
    %22 = arith.addf %19, %21 : vector<8x32xf32>
    %cst_17 = arith.constant 0.000000e+00 : f32
    %23 = vector.broadcast %cst_17 : f32 to vector<8x32xf32>
    %24 = arith.maximumf %22, %23 : vector<8x32xf32>
    %25 = arith.truncf %24 : vector<8x32xf32> to vector<8x32xbf16>
    %c0_18 = arith.constant 0 : index
    %c0_19 = arith.constant 0 : index
    %26 = vector.load %arg8[%c0_18, %c0_19] : memref<32x64xbf16, #tpu.memory_space<vmem>>, vector<32x64xbf16>
    %cst_20 = arith.constant dense<0.000000e+00> : vector<8x64xf32>
    %27 = tpu.matmul %25, %26, %cst_20 {dimension_numbers = #tpu.dot_dimension_numbers<[1], [0], [0], [1], [0, 0, 1, 1], [], []>} : vector<8x32xbf16>, vector<32x64xbf16>, vector<8x64xf32> -> vector<8x64xf32>
    %c0_21 = arith.constant 0 : index
    %c0_22 = arith.constant 0 : index
    %28 = vector.load %arg9[%c0_21, %c0_22] : memref<1x64xf32, #tpu.memory_space<vmem>>, vector<1x64xf32>
    %29 = vector.broadcast %28 : vector<1x64xf32> to vector<8x64xf32>
    %30 = arith.addf %27, %29 : vector<8x64xf32>
    %31 = arith.truncf %30 : vector<8x64xf32> to vector<8x64xbf16>
    %c0_23 = arith.constant 0 : index
    %c0_24 = arith.constant 0 : index
    %32 = vector.load %arg10[%c0_23, %c0_24] : memref<8x64xbf16, #tpu.memory_space<vmem>>, vector<8x64xbf16>
    tpu.vector_store %arg10[%c0_23, %c0_24], %31 {strides = array<i32>} : memref<8x64xbf16, #tpu.memory_space<vmem>>, vector<8x64xbf16>,
    return
  }
  func.func @transform_0(%arg0: i32) -> (i32, i32) {
    %c0_i32 = arith.constant 0 : i32
    %c0_i32_0 = arith.constant 0 : i32
    return %arg0, %c0_i32 : i32, i32
  }
  func.func @transform_1(%arg0: i32) -> (i32, i32) {
    %c0_i32 = arith.constant 0 : i32
    %c0_i32_0 = arith.constant 0 : i32
    %c0_i32_1 = arith.constant 0 : i32
    return %c0_i32, %c0_i32_0 : i32, i32
  }
  func.func @transform_2(%arg0: i32) -> (i32, i32) {
    %c0_i32 = arith.constant 0 : i32
    %c0_i32_0 = arith.constant 0 : i32
    %c0_i32_1 = arith.constant 0 : i32
    return %c0_i32, %c0_i32_0 : i32, i32
  }
  func.func @transform_3(%arg0: i32) -> (i32, i32) {
    %c0_i32 = arith.constant 0 : i32
    %c0_i32_0 = arith.constant 0 : i32
    %c0_i32_1 = arith.constant 0 : i32
    return %c0_i32, %c0_i32_0 : i32, i32
  }
  func.func @transform_4(%arg0: i32) -> (i32, i32) {
    %c0_i32 = arith.constant 0 : i32
    %c0_i32_0 = arith.constant 0 : i32
    %c0_i32_1 = arith.constant 0 : i32
    return %c0_i32, %c0_i32_0 : i32, i32
  }
  func.func @transform_5(%arg0: i32) -> (i32, i32) {
    %c0_i32 = arith.constant 0 : i32
    %c0_i32_0 = arith.constant 0 : i32
    %c0_i32_1 = arith.constant 0 : i32
    return %c0_i32, %c0_i32_0 : i32, i32
  }
  func.func @transform_6(%arg0: i32) -> (i32, i32) {
    %c0_i32 = arith.constant 0 : i32
    %c0_i32_0 = arith.constant 0 : i32
    %c0_i32_1 = arith.constant 0 : i32
    return %c0_i32, %c0_i32_0 : i32, i32
  }
  func.func @transform_7(%arg0: i32) -> (i32, i32) {
    %c0_i32 = arith.constant 0 : i32
    %c0_i32_0 = arith.constant 0 : i32
    %c0_i32_1 = arith.constant 0 : i32
    return %c0_i32, %c0_i32_0 : i32, i32
  }
  func.func @transform_8(%arg0: i32) -> (i32, i32) {
    %c0_i32 = arith.constant 0 : i32
    %c0_i32_0 = arith.constant 0 : i32
    %c0_i32_1 = arith.constant 0 : i32
    return %c0_i32, %c0_i32_0 : i32, i32
  }
  func.func @transform_9(%arg0: i32) -> (i32, i32) {
    %c0_i32 = arith.constant 0 : i32
    %c0_i32_0 = arith.constant 0 : i32
    return %arg0, %c0_i32 : i32, i32
  }
}

</mosaic_0001>

<llo_original>
// kernel: tpu_custom_call.1
$region0: #{tpu_custom_call.1}
  #allocation0 [shape = 'u32[]', space=smem, size = 0x4, offset = 0x4, fixed_abs, tag = 'smem constant byte address 0x4 - core index']
  #allocation1 [shape = 'u32[144,128]{1,0:T(1,128)}', space=vmem, size = 0x12000, scoped, tag = 'internal scratch']
  %s0 = inlined_call_operand.vmem [shape: f32[16,64], index: 0, kind: input, shape index: {}]
  %s1 = inlined_call_operand.vmem [shape: bf16[64,32], index: 1, kind: input, shape index: {}]
  %s2 = inlined_call_operand.vmem [shape: f32[1,32], index: 2, kind: input, shape index: {}]
  %s3 = inlined_call_operand.vmem [shape: bf16[32,16], index: 3, kind: input, shape index: {}]
  %s4 = inlined_call_operand.vmem [shape: f32[1,16], index: 4, kind: input, shape index: {}]
  %s5 = inlined_call_operand.vmem [shape: bf16[16,32], index: 5, kind: input, shape index: {}]
  %s6 = inlined_call_operand.vmem [shape: f32[1,32], index: 6, kind: input, shape index: {}]
  %s7 = inlined_call_operand.vmem [shape: bf16[32,64], index: 7, kind: input, shape index: {}]
  %s8 = inlined_call_operand.vmem [shape: f32[1,64], index: 8, kind: input, shape index: {}]
  %s9 = inlined_call_operand.hbm [shape: bf16[16,64], index: 9, kind: output, shape index: {}]
  %s10 = sld [smem:[#allocation0]]
  $region69: #{tpu_custom_call.1} parent=0
    _
  %s12 = ssub.s32 1, %s10
  %s13 = scalar_select 0, %s12, %s10
  $region1: #{tpu_custom_call.1} parent=0
    #allocation2 [shape = 'u8[4096]{0}', space=vmem, size = 0x1000, scoped, tag = 'output window, operand 0']
    #allocation3 [shape = 's32[2]{0}', space=sflag, size = 0x8, scoped, tag = 'scoped memory for tpu_custom_call.1']
    %14 = vsyncpa [#allocation3], 0
    %s15 = scalar_lea.sflag [#allocation3], 1
    %16 = vsyncpa %s15, 0
    loop: start=0, step=1, limit=4
    $region2: #{tpu_custom_call.1} parent=1 // loop_pre_header
      _
    $region3: #{tpu_custom_call.1} parent=1 // loop_header
      %s18 = sphi 0, %s22
      %p19 = scmp.ge.s32.totalorder %s18, 4
      %s28 = sphi 0, %s30
      %s31 = sphi 0, %s28
      %s32 = sphi 0, %s31
      %s48 = sphi 0, %s32
      %s52 = sphi 0, %s52
      %s54 = sphi 0, %s52
      %s55 = sphi 0, %s54
      %s69 = sphi 0, %s55
      %s73 = sphi 0, %s73
      %s75 = sphi 0, %s73
      %s76 = sphi 0, %s75
      %s90 = sphi 0, %s76
      %s94 = sphi 0, %s94
      %s96 = sphi 0, %s94
      %s97 = sphi 0, %s96
      %s111 = sphi 0, %s97
      %s115 = sphi 0, %s115
      %s117 = sphi 0, %s115
      %s118 = sphi 0, %s117
      %s132 = sphi 0, %s118
      %s136 = sphi 0, %s136
      %s138 = sphi 0, %s136
      %s139 = sphi 0, %s138
      %s153 = sphi 0, %s139
      %s157 = sphi 0, %s157
      %s159 = sphi 0, %s157
      %s160 = sphi 0, %s159
      %s174 = sphi 0, %s160
      %s178 = sphi 0, %s178
      %s180 = sphi 0, %s178
      %s181 = sphi 0, %s180
      %s195 = sphi 0, %s181
      %s199 = sphi 0, %s199
      %s201 = sphi 0, %s199
      %s202 = sphi 0, %s201
      %s216 = sphi 0, %s202
      %s222 = sphi 0, %s224
      %s225 = sphi 0, %s222
      %s226 = sphi 0, %s225
      %s242 = sphi 0, %s226
    $region4: #{tpu_custom_call.1} parent=1 // loop_header_branch
      %21 = sbr.rel (%p19) target = $region8
    $region5: #{tpu_custom_call.1} parent=1 // loop_body
      %s23 = ssub.s32 %s18, 1
      %s24 = ssub.s32 %s18, 2
      %s25 = sadd.s32 %s18, 1
      %s26 = ssub.s32 %s18, %s25
      %p27 = scmp.eq.s32.totalorder %s26, 0
      %s29 = sadd.s32 %s28, 1
      %s30 = scalar_select %p27, %s28, %s29
      %p33 = pneg %p27
      %p34 = scmp.eq.s32.totalorder %s18, 1
      %p35 = por %p33, %p34
      %p36 = scmp.ne.s32.totalorder %s28, %s31
      %p37 = scmp.eq.s32.totalorder %s18, 0
      %p38 = por %p36, %p37
      %p39 = scmp.ne.s32.totalorder %s28, %s31
      %p40 = scmp.eq.s32.totalorder %s23, 1
      %p41 = por %p39, %p40
      %p42 = scmp.ne.s32.totalorder %s31, %s32
      %p43 = scmp.eq.s32.totalorder %s23, 0
      %p44 = por %p42, %p43
      %p45 = scmp.ne.s32.totalorder %s31, %s32
      %p46 = scmp.eq.s32.totalorder %s24, 1
      %p47 = por %p45, %p46
      %p49 = scmp.ne.s32.totalorder %s32, %s48
      %p50 = scmp.eq.s32.totalorder %s24, 0
      %p51 = por %p49, %p50
      %s53 = sadd.s32 %s52, 1
      %p56 = scmp.eq.s32.totalorder %s18, 1
      %p57 = scmp.ne.s32.totalorder %s52, %s54
      %p58 = scmp.eq.s32.totalorder %s18, 0
      %p59 = por %p57, %p58
      %p60 = scmp.ne.s32.totalorder %s52, %s54
      %p61 = scmp.eq.s32.totalorder %s23, 1
      %p62 = por %p60, %p61
      %p63 = scmp.ne.s32.totalorder %s54, %s55
      %p64 = scmp.eq.s32.totalorder %s23, 0
      %p65 = por %p63, %p64
      %p66 = scmp.ne.s32.totalorder %s54, %s55
      %p67 = scmp.eq.s32.totalorder %s24, 1
      %p68 = por %p66, %p67
      %p70 = scmp.ne.s32.totalorder %s55, %s69
      %p71 = scmp.eq.s32.totalorder %s24, 0
      %p72 = por %p70, %p71
      %s74 = sadd.s32 %s73, 1
      %p77 = scmp.eq.s32.totalorder %s18, 1
      %p78 = scmp.ne.s32.totalorder %s73, %s75
      %p79 = scmp.eq.s32.totalorder %s18, 0
      %p80 = por %p78, %p79
      %p81 = scmp.ne.s32.totalorder %s73, %s75
      %p82 = scmp.eq.s32.totalorder %s23, 1
      %p83 = por %p81, %p82
      %p84 = scmp.ne.s32.totalorder %s75, %s76
      %p85 = scmp.eq.s32.totalorder %s23, 0
      %p86 = por %p84, %p85
      %p87 = scmp.ne.s32.totalorder %s75, %s76
      %p88 = scmp.eq.s32.totalorder %s24, 1
      %p89 = por %p87, %p88
      %p91 = scmp.ne.s32.totalorder %s76, %s90
      %p92 = scmp.eq.s32.totalorder %s24, 0
      %p93 = por %p91, %p92
      %s95 = sadd.s32 %s94, 1
      %p98 = scmp.eq.s32.totalorder %s18, 1
      %p99 = scmp.ne.s32.totalorder %s94, %s96
      %p100 = scmp.eq.s32.totalorder %s18, 0
      %p101 = por %p99, %p100
      %p102 = scmp.ne.s32.totalorder %s94, %s96
      %p103 = scmp.eq.s32.totalorder %s23, 1
      %p104 = por %p102, %p103
      %p105 = scmp.ne.s32.totalorder %s96, %s97
      %p106 = scmp.eq.s32.totalorder %s23, 0
      %p107 = por %p105, %p106
      %p108 = scmp.ne.s32.totalorder %s96, %s97
      %p109 = scmp.eq.s32.totalorder %s24, 1
      %p110 = por %p108, %p109
      %p112 = scmp.ne.s32.totalorder %s97, %s111
      %p113 = scmp.eq.s32.totalorder %s24, 0
      %p114 = por %p112, %p113
      %s116 = sadd.s32 %s115, 1
      %p119 = scmp.eq.s32.totalorder %s18, 1
      %p120 = scmp.ne.s32.totalorder %s115, %s117
      %p121 = scmp.eq.s32.totalorder %s18, 0
      %p122 = por %p120, %p121
      %p123 = scmp.ne.s32.totalorder %s115, %s117
      %p124 = scmp.eq.s32.totalorder %s23, 1
      %p125 = por %p123, %p124
      %p126 = scmp.ne.s32.totalorder %s117, %s118
      %p127 = scmp.eq.s32.totalorder %s23, 0
      %p128 = por %p126, %p127
      %p129 = scmp.ne.s32.totalorder %s117, %s118
      %p130 = scmp.eq.s32.totalorder %s24, 1
      %p131 = por %p129, %p130
      %p133 = scmp.ne.s32.totalorder %s118, %s132
      %p134 = scmp.eq.s32.totalorder %s24, 0
      %p135 = por %p133, %p134
      %s137 = sadd.s32 %s136, 1
      %p140 = scmp.eq.s32.totalorder %s18, 1
      %p141 = scmp.ne.s32.totalorder %s136, %s138
      %p142 = scmp.eq.s32.totalorder %s18, 0
      %p143 = por %p141, %p142
      %p144 = scmp.ne.s32.totalorder %s136, %s138
      %p145 = scmp.eq.s32.totalorder %s23, 1
      %p146 = por %p144, %p145
      %p147 = scmp.ne.s32.totalorder %s138, %s139
      %p148 = scmp.eq.s32.totalorder %s23, 0
      %p149 = por %p147, %p148
      %p150 = scmp.ne.s32.totalorder %s138, %s139
      %p151 = scmp.eq.s32.totalorder %s24, 1
      %p152 = por %p150, %p151
      %p154 = scmp.ne.s32.totalorder %s139, %s153
      %p155 = scmp.eq.s32.totalorder %s24, 0
      %p156 = por %p154, %p155
      %s158 = sadd.s32 %s157, 1
      %p161 = scmp.eq.s32.totalorder %s18, 1
      %p162 = scmp.ne.s32.totalorder %s157, %s159
      %p163 = scmp.eq.s32.totalorder %s18, 0
      %p164 = por %p162, %p163
      %p165 = scmp.ne.s32.totalorder %s157, %s159
      %p166 = scmp.eq.s32.totalorder %s23, 1
      %p167 = por %p165, %p166
      %p168 = scmp.ne.s32.totalorder %s159, %s160
      %p169 = scmp.eq.s32.totalorder %s23, 0
      %p170 = por %p168, %p169
      %p171 = scmp.ne.s32.totalorder %s159, %s160
      %p172 = scmp.eq.s32.totalorder %s24, 1
      %p173 = por %p171, %p172
      %p175 = scmp.ne.s32.totalorder %s160, %s174
      %p176 = scmp.eq.s32.totalorder %s24, 0
      %p177 = por %p175, %p176
      %s179 = sadd.s32 %s178, 1
      %p182 = scmp.eq.s32.totalorder %s18, 1
      %p183 = scmp.ne.s32.totalorder %s178, %s180
      %p184 = scmp.eq.s32.totalorder %s18, 0
      %p185 = por %p183, %p184
      %p186 = scmp.ne.s32.totalorder %s178, %s180
      %p187 = scmp.eq.s32.totalorder %s23, 1
      %p188 = por %p186, %p187
      %p189 = scmp.ne.s32.totalorder %s180, %s181
      %p190 = scmp.eq.s32.totalorder %s23, 0
      %p191 = por %p189, %p190
      %p192 = scmp.ne.s32.totalorder %s180, %s181
      %p193 = scmp.eq.s32.totalorder %s24, 1
      %p194 = por %p192, %p193
      %p196 = scmp.ne.s32.totalorder %s181, %s195
      %p197 = scmp.eq.s32.totalorder %s24, 0
      %p198 = por %p196, %p197
      %s200 = sadd.s32 %s199, 1
      %p203 = scmp.eq.s32.totalorder %s18, 1
      %p204 = scmp.ne.s32.totalorder %s199, %s201
      %p205 = scmp.eq.s32.totalorder %s18, 0
      %p206 = por %p204, %p205
      %p207 = scmp.ne.s32.totalorder %s199, %s201
      %p208 = scmp.eq.s32.totalorder %s23, 1
      %p209 = por %p207, %p208
      %p210 = scmp.ne.s32.totalorder %s201, %s202
      %p211 = scmp.eq.s32.totalorder %s23, 0
      %p212 = por %p210, %p211
      %p213 = scmp.ne.s32.totalorder %s201, %s202
      %p214 = scmp.eq.s32.totalorder %s24, 1
      %p215 = por %p213, %p214
      %p217 = scmp.ne.s32.totalorder %s202, %s216
      %p218 = scmp.eq.s32.totalorder %s24, 0
      %p219 = por %p217, %p218
      %s220 = ssub.s32 %s18, %s25
      %p221 = scmp.eq.s32.totalorder %s220, 0
      %s223 = sadd.s32 %s222, 1
      %s224 = scalar_select %p221, %s222, %s223
      %p227 = pneg %p221
      %p228 = scmp.eq.s32.totalorder %s18, 1
      %p229 = por %p227, %p228
      %p230 = scmp.ne.s32.totalorder %s222, %s225
      %p231 = scmp.eq.s32.totalorder %s18, 0
      %p232 = por %p230, %p231
      %p233 = scmp.ne.s32.totalorder %s222, %s225
      %p234 = scmp.eq.s32.totalorder %s23, 1
      %p235 = por %p233, %p234
      %p236 = scmp.ne.s32.totalorder %s225, %s226
      %p237 = scmp.eq.s32.totalorder %s23, 0
      %p238 = por %p236, %p237
      %p239 = scmp.ne.s32.totalorder %s225, %s226
      %p240 = scmp.eq.s32.totalorder %s24, 1
      %p241 = por %p239, %p240
      %p243 = scmp.ne.s32.totalorder %s226, %s242
      %p244 = scmp.eq.s32.totalorder %s24, 0
      %p245 = por %p243, %p244
      %p246 = scmp.le.s32.totalorder 1, %s18
      %p247 = scmp.lt.s32.totalorder %s18, 3
      %p248 = pnand %p246, %p247
      %p249 = pneg %p248
      // Predicated region
      $region9: #{tpu_custom_call.1} parent=5 // pred_check
        _
      $region10: #{tpu_custom_call.1} parent=5 // pred_check_branch
        %251 = sbr.rel (%p248) target = $region12
      $region11: #{tpu_custom_call.1} parent=5 // pred_region
        %s252 = ssub.s32 %s18, 1
        // Predicated region
        $region13: #{tpu_custom_call.1} parent=11 // pred_check
          %p253 = pneg %p65
        $region14: #{tpu_custom_call.1} parent=11 // pred_check_branch
          %255 = sbr.rel (%p253) target = $region16
        $region15: #{tpu_custom_call.1} parent=11 // pred_region
          _
        $region16: #{tpu_custom_call.1} parent=11 // pred_fallthru
          _
        // Predicated region
        $region17: #{tpu_custom_call.1} parent=11 // pred_check
          %p256 = pneg %p86
        $region18: #{tpu_custom_call.1} parent=11 // pred_check_branch
          %258 = sbr.rel (%p256) target = $region20
        $region19: #{tpu_custom_call.1} parent=11 // pred_region
          _
        $region20: #{tpu_custom_call.1} parent=11 // pred_fallthru
          _
        // Predicated region
        $region21: #{tpu_custom_call.1} parent=11 // pred_check
          %p259 = pneg %p107
        $region22: #{tpu_custom_call.1} parent=11 // pred_check_branch
          %261 = sbr.rel (%p259) target = $region24
        $region23: #{tpu_custom_call.1} parent=11 // pred_region
          _
        $region24: #{tpu_custom_call.1} parent=11 // pred_fallthru
          _
        // Predicated region
        $region25: #{tpu_custom_call.1} parent=11 // pred_check
          %p262 = pneg %p128
        $region26: #{tpu_custom_call.1} parent=11 // pred_check_branch
          %264 = sbr.rel (%p262) target = $region28
        $region27: #{tpu_custom_call.1} parent=11 // pred_region
          _
        $region28: #{tpu_custom_call.1} parent=11 // pred_fallthru
          _
        // Predicated region
        $region29: #{tpu_custom_call.1} parent=11 // pred_check
          %p265 = pneg %p149
        $region30: #{tpu_custom_call.1} parent=11 // pred_check_branch
          %267 = sbr.rel (%p265) target = $region32
        $region31: #{tpu_custom_call.1} parent=11 // pred_region
          _
        $region32: #{tpu_custom_call.1} parent=11 // pred_fallthru
          _
        // Predicated region
        $region33: #{tpu_custom_call.1} parent=11 // pred_check
          %p268 = pneg %p170
        $region34: #{tpu_custom_call.1} parent=11 // pred_check_branch
          %270 = sbr.rel (%p268) target = $region36
        $region35: #{tpu_custom_call.1} parent=11 // pred_region
          _
        $region36: #{tpu_custom_call.1} parent=11 // pred_fallthru
          _
        // Predicated region
        $region37: #{tpu_custom_call.1} parent=11 // pred_check
          %p271 = pneg %p191
        $region38: #{tpu_custom_call.1} parent=11 // pred_check_branch
          %273 = sbr.rel (%p271) target = $region40
        $region39: #{tpu_custom_call.1} parent=11 // pred_region
          _
        $region40: #{tpu_custom_call.1} parent=11 // pred_fallthru
          _
        // Predicated region
        $region41: #{tpu_custom_call.1} parent=11 // pred_check
          %p274 = pneg %p212
        $region42: #{tpu_custom_call.1} parent=11 // pred_check_branch
          %276 = sbr.rel (%p274) target = $region44
        $region43: #{tpu_custom_call.1} parent=11 // pred_region
          _
        $region44: #{tpu_custom_call.1} parent=11 // pred_fallthru
          _
      $region12: #{tpu_custom_call.1} parent=5 // pred_fallthru
        _
      %p277 = scmp.lt.s32.totalorder %s18, 2
      // Predicated region
      $region45: #{tpu_custom_call.1} parent=5 // pred_check
        %p278 = pneg %p277
      $region46: #{tpu_custom_call.1} parent=5 // pred_check_branch
        %280 = sbr.rel (%p278) target = $region48
      $region47: #{tpu_custom_call.1} parent=5 // pred_region
        // Predicated region
        $region49: #{tpu_custom_call.1} parent=47 // pred_check
          %p281 = pneg %p38
        $region50: #{tpu_custom_call.1} parent=47 // pred_check_branch
          %283 = sbr.rel (%p281) target = $region52
        $region51: #{tpu_custom_call.1} parent=47 // pred_region
          %p284 = scmp.lt.s32.totalorder %s18, 1
          %s285 = scalar_select %p284, %s18, 1
          %s286 = smul.addr %s285, 8
          %s287 = scalar_lea.vmem %s0, %s286
        $region52: #{tpu_custom_call.1} parent=47 // pred_fallthru
          _
      $region48: #{tpu_custom_call.1} parent=5 // pred_fallthru
        _
      %p288 = scmp.le.s32.totalorder 1, %s18
      %p289 = scmp.lt.s32.totalorder %s18, 3
      %p290 = pnand %p288, %p289
      %p291 = pneg %p290
      // Predicated region
      $region53: #{tpu_custom_call.1} parent=5 // pred_check
        _
      $region54: #{tpu_custom_call.1} parent=5 // pred_check_branch
        %293 = sbr.rel (%p290) target = $region56
      $region55: #{tpu_custom_call.1} parent=5 // pred_region
        %s294 = ssub.s32 %s18, 1
        %p295 = scmp.lt.s32.totalorder %s23, 1
        %s296 = scalar_select %p295, %s23, 1
        %s297 = smul.addr %s296, 8
        %s298 = scalar_lea.vmem %s0, %s297
        %p299 = pneg %p44
        %p300 = pneg %p41
        %p301 = pneg %p65
        %p302 = pneg %p62
        %p303 = pneg %p86
        %p304 = pneg %p83
        %p305 = pneg %p107
        %p306 = pneg %p104
        %p307 = pneg %p128
        %p308 = pneg %p125
        %p309 = pneg %p149
        %p310 = pneg %p146
        %p311 = pneg %p170
        %p312 = pneg %p167
        %p313 = pneg %p191
        %p314 = pneg %p188
        %p315 = pneg %p212
        %p316 = pneg %p209
        %p317 = pneg %p238
        %p318 = pneg %p235
        %s319 = sand.u32 %s225, 1
        %s320 = scalar_lea.sflag [#allocation3], %s319
        %s321 = sand.u32 %s225, 1
        %s322 = smul.addr %s321, 4
        %s323 = scalar_lea.vmem [#allocation2], %s322
        %p324 = scmp.lt.s32.totalorder %s23, 1
        %s325 = scalar_select %p324, %s23, 1
        %s326 = smul.addr %s325, 8
        %s327 = scalar_lea.vmem %s0, %s326
        %v329 = vld [vmem:[%s327] sm:$0xff]
        %v330 = vpack.c.bf16 %v329, %v329
        %v331 = vld [vmem:[%s1] sm:$0xf]
        %v332 = vld [vmem:[%s1 + $0x4] sm:$0xf]
        %v333 = vld [vmem:[%s1 + $0x8] sm:$0xf]
        %v334 = vld [vmem:[%s1 + $0xc] sm:$0xf]
        %v335 = vld [vmem:[%s1 + $0x10] sm:$0xf]
        %v336 = vld [vmem:[%s1 + $0x14] sm:$0xf]
        %v337 = vld [vmem:[%s1 + $0x18] sm:$0xf]
        %v338 = vld [vmem:[%s1 + $0x1c] sm:$0xf]
        %v339 = vld [vmem:[%s2] sm:$0x1]
        %v341 = vlaneseq
        %v342 = vshrl.u32 %v341, 7
        %v343 = vsub.s32 0, %v342
        %v344 = vrot.slane %v339, %v343
        %v354 = vunpack.c.l.b16 %v331
        %v355 = vunpack.c.l.b16 %v332
        %v356 = vunpack.c.l.b16 %v333
        %v357 = vunpack.c.l.b16 %v334
        %v358 = vunpack.c.l.b16 %v335
        %v359 = vunpack.c.l.b16 %v336
        %v360 = vunpack.c.l.b16 %v337
        %v361 = vunpack.c.l.b16 %v338
        %v362 = vpack.c.b16 %v355, %v354
        %v363 = vpack.c.b16 %v357, %v356
        %v364 = vpack.c.b16 %v359, %v358
        %v365 = vpack.c.b16 %v361, %v360
        %vm370 = vcmask 523264
        %v372 = vsel %vm370, %v330, 0
        %374 = vmatprep.subr.bf16.mxu0 0
        %375 = vmatpush1.bf16.msra.mxu0 %v362
        %376 = vmatprep.subr.bf16.mxu0 0
        %377 = vmatpush1.bf16.msra.mxu0 %v363
        %378 = vmatprep.subr.bf16.mxu0 0
        %379 = vmatpush1.bf16.msra.mxu0 %v364
        %380 = vmatprep.subr.bf16.mxu0 0
        %381 = vmatpush1.bf16.msra.mxu0 %v365
        %382 = vmatprep.subr.bf16.mxu0 0
        %383 = vmatpush1.bf16.msra.mxu0 0
        %384 = vmatprep.subr.bf16.mxu0 0
        %385 = vmatpush1.bf16.msra.mxu0 0
        %386 = vmatprep.subr.bf16.mxu0 0
        %387 = vmatpush1.bf16.msra.mxu0 0
        %388 = vmatprep.subr.bf16.mxu0 0
        %389 = vmatpush1.bf16.msra.mxu0 0
        %390 = vmatprep.subr.bf16.mxu0 0
        %391 = vmatpush1.bf16.msra.mxu0 0
        %392 = vmatprep.subr.bf16.mxu0 0
        %393 = vmatpush1.bf16.msra.mxu0 0
        %394 = vmatprep.subr.bf16.mxu0 0
        %395 = vmatpush1.bf16.msra.mxu0 0
        %396 = vmatprep.subr.bf16.mxu0 0
        %397 = vmatpush1.bf16.msra.mxu0 0
        %398 = vmatprep.subr.bf16.mxu0 0
        %399 = vmatpush1.bf16.msra.mxu0 0
        %400 = vmatprep.subr.bf16.mxu0 0
        %401 = vmatpush1.bf16.msra.mxu0 0
        %402 = vmatprep.subr.bf16.mxu0 0
        %403 = vmatpush1.bf16.msra.mxu0 0
        %404 = vmatprep.subr.bf16.mxu0 0
        %405 = vmatpush1.bf16.msra.mxu0 0
        %406 = vmatprep.mubr.bf16.mxu0 0
        %407 = vmatmul.mubr.bf16.gmra.mrb[0].mxu0 %v372
        %v408 = vpop.f32.mrb[0].mxu0
        %v409 = vadd.f32 %v344, %v408
        %v410 = vpop.f32.mrb[0].mxu0
        %v411 = vpop.f32.mrb[0].mxu0
        %v412 = vpop.f32.mrb[0].mxu0
        %413 = vdwg.mxu0
        %v414 = vmax.f32 %v409, 0.0
        %v415 = vpack.c.bf16 %v414, %v414
        %v416 = vld [vmem:[%s3] sm:$0xf]
        %v417 = vld [vmem:[%s3 + $0x4] sm:$0xf]
        %v418 = vld [vmem:[%s3 + $0x8] sm:$0xf]
        %v419 = vld [vmem:[%s3 + $0xc] sm:$0xf]
        %v420 = vld [vmem:[%s4] sm:$0x1]
        %v422 = vlaneseq
        %v423 = vshrl.u32 %v422, 7
        %v424 = vsub.s32 0, %v423
        %v425 = vrot.slane %v420, %v424
        %v431 = vunpack.c.l.b16 %v416
        %v432 = vunpack.c.l.b16 %v417
        %v433 = vunpack.c.l.b16 %v418
        %v434 = vunpack.c.l.b16 %v419
        %v435 = vpack.c.b16 %v432, %v431
        %v436 = vpack.c.b16 %v434, %v433
        %vm439 = vcmask 261120
        %v441 = vsel %vm439, %v415, 0
        %443 = vmatprep.subr.bf16.mxu0 0
        %444 = vmatpush1.bf16.msra.mxu0 %v435
        %445 = vmatprep.subr.bf16.mxu0 0
        %446 = vmatpush1.bf16.msra.mxu0 %v436
        %447 = vmatprep.subr.bf16.mxu0 0
        %448 = vmatpush1.bf16.msra.mxu0 0
        %449 = vmatprep.subr.bf16.mxu0 0
        %450 = vmatpush1.bf16.msra.mxu0 0
        %451 = vmatprep.subr.bf16.mxu0 0
        %452 = vmatpush1.bf16.msra.mxu0 0
        %453 = vmatprep.subr.bf16.mxu0 0
        %454 = vmatpush1.bf16.msra.mxu0 0
        %455 = vmatprep.subr.bf16.mxu0 0
        %456 = vmatpush1.bf16.msra.mxu0 0
        %457 = vmatprep.subr.bf16.mxu0 0
        %458 = vmatpush1.bf16.msra.mxu0 0
        %459 = vmatprep.subr.bf16.mxu0 0
        %460 = vmatpush1.bf16.msra.mxu0 0
        %461 = vmatprep.subr.bf16.mxu0 0
        %462 = vmatpush1.bf16.msra.mxu0 0
        %463 = vmatprep.subr.bf16.mxu0 0
        %464 = vmatpush1.bf16.msra.mxu0 0
        %465 = vmatprep.subr.bf16.mxu0 0
        %466 = vmatpush1.bf16.msra.mxu0 0
        %467 = vmatprep.subr.bf16.mxu0 0
        %468 = vmatpush1.bf16.msra.mxu0 0
        %469 = vmatprep.subr.bf16.mxu0 0
        %470 = vmatpush1.bf16.msra.mxu0 0
        %471 = vmatprep.subr.bf16.mxu0 0
        %472 = vmatpush1.bf16.msra.mxu0 0
        %473 = vmatprep.subr.bf16.mxu0 0
        %474 = vmatpush1.bf16.msra.mxu0 0
        %475 = vmatprep.mubr.bf16.mxu0 0
        %476 = vmatmul.mubr.bf16.gmra.mrb[0].mxu0 %v441
        %v477 = vpop.f32.mrb[0].mxu0
        %v478 = vadd.f32 %v425, %v477
        %v479 = vpop.f32.mrb[0].mxu0
        %v480 = vpop.f32.mrb[0].mxu0
        %v481 = vpop.f32.mrb[0].mxu0
        %482 = vdwg.mxu0
        %v483 = vmax.f32 %v478, 0.0
        %v484 = vpack.c.bf16 %v483, %v483
        %v485 = vld [vmem:[%s5] sm:$0xf]
        %v486 = vld [vmem:[%s5 + $0x4] sm:$0xf]
        %v487 = vld [vmem:[%s6] sm:$0x1]
        %v489 = vlaneseq
        %v490 = vshrl.u32 %v489, 7
        %v491 = vsub.s32 0, %v490
        %v492 = vrot.slane %v487, %v491
        %v496 = vunpack.c.l.b16 %v485
        %v497 = vunpack.c.l.b16 %v486
        %v498 = vpack.c.b16 %v497, %v496
        %vm500 = vcmask 130048
        %v502 = vsel %vm500, %v484, 0
        %504 = vmatprep.subr.bf16.mxu0 0
        %505 = vmatpush1.bf16.msra.mxu0 %v498
        %506 = vmatprep.subr.bf16.mxu0 0
        %507 = vmatpush1.bf16.msra.mxu0 0
        %508 = vmatprep.subr.bf16.mxu0 0
        %509 = vmatpush1.bf16.msra.mxu0 0
        %510 = vmatprep.subr.bf16.mxu0 0
        %511 = vmatpush1.bf16.msra.mxu0 0
        %512 = vmatprep.subr.bf16.mxu0 0
        %513 = vmatpush1.bf16.msra.mxu0 0
        %514 = vmatprep.subr.bf16.mxu0 0
        %515 = vmatpush1.bf16.msra.mxu0 0
        %516 = vmatprep.subr.bf16.mxu0 0
        %517 = vmatpush1.bf16.msra.mxu0 0
        %518 = vmatprep.subr.bf16.mxu0 0
        %519 = vmatpush1.bf16.msra.mxu0 0
        %520 = vmatprep.subr.bf16.mxu0 0
        %521 = vmatpush1.bf16.msra.mxu0 0
        %522 = vmatprep.subr.bf16.mxu0 0
        %523 = vmatpush1.bf16.msra.mxu0 0
        %524 = vmatprep.subr.bf16.mxu0 0
        %525 = vmatpush1.bf16.msra.mxu0 0
        %526 = vmatprep.subr.bf16.mxu0 0
        %527 = vmatpush1.bf16.msra.mxu0 0
        %528 = vmatprep.subr.bf16.mxu0 0
        %529 = vmatpush1.bf16.msra.mxu0 0
        %530 = vmatprep.subr.bf16.mxu0 0
        %531 = vmatpush1.bf16.msra.mxu0 0
        %532 = vmatprep.subr.bf16.mxu0 0
        %533 = vmatpush1.bf16.msra.mxu0 0
        %534 = vmatprep.subr.bf16.mxu0 0
        %535 = vmatpush1.bf16.msra.mxu0 0
        %536 = vmatprep.mubr.bf16.mxu0 0
        %537 = vmatmul.mubr.bf16.gmra.mrb[0].mxu0 %v502
        %v538 = vpop.f32.mrb[0].mxu0
        %v539 = vadd.f32 %v492, %v538
        %v540 = vpop.f32.mrb[0].mxu0
        %v541 = vpop.f32.mrb[0].mxu0
        %v542 = vpop.f32.mrb[0].mxu0
        %543 = vdwg.mxu0
        %v544 = vmax.f32 %v539, 0.0
        %v545 = vpack.c.bf16 %v544, %v544
        %v546 = vld [vmem:[%s7] sm:$0xf]
        %v547 = vld [vmem:[%s7 + $0x4] sm:$0xf]
        %v548 = vld [vmem:[%s7 + $0x8] sm:$0xf]
        %v549 = vld [vmem:[%s7 + $0xc] sm:$0xf]
        %v550 = vld [vmem:[%s8] sm:$0x1]
        %v552 = vlaneseq
        %v553 = vshrl.u32 %v552, 7
        %v554 = vsub.s32 0, %v553
        %v555 = vrot.slane %v550, %v554
        %v561 = vunpack.c.l.b16 %v546
        %v562 = vunpack.c.l.b16 %v547
        %v563 = vunpack.c.l.b16 %v548
        %v564 = vunpack.c.l.b16 %v549
        %v565 = vpack.c.b16 %v562, %v561
        %v566 = vpack.c.b16 %v564, %v563
        %v570 = vsel %vm439, %v545, 0
        %572 = vmatprep.subr.bf16.mxu0 0
        %573 = vmatpush1.bf16.msra.mxu0 %v565
        %574 = vmatprep.subr.bf16.mxu0 0
        %575 = vmatpush1.bf16.msra.mxu0 %v566
        %576 = vmatprep.subr.bf16.mxu0 0
        %577 = vmatpush1.bf16.msra.mxu0 0
        %578 = vmatprep.subr.bf16.mxu0 0
        %579 = vmatpush1.bf16.msra.mxu0 0
        %580 = vmatprep.subr.bf16.mxu0 0
        %581 = vmatpush1.bf16.msra.mxu0 0
        %582 = vmatprep.subr.bf16.mxu0 0
        %583 = vmatpush1.bf16.msra.mxu0 0
        %584 = vmatprep.subr.bf16.mxu0 0
        %585 = vmatpush1.bf16.msra.mxu0 0
        %586 = vmatprep.subr.bf16.mxu0 0
        %587 = vmatpush1.bf16.msra.mxu0 0
        %588 = vmatprep.subr.bf16.mxu0 0
        %589 = vmatpush1.bf16.msra.mxu0 0
        %590 = vmatprep.subr.bf16.mxu0 0
        %591 = vmatpush1.bf16.msra.mxu0 0
        %592 = vmatprep.subr.bf16.mxu0 0
        %593 = vmatpush1.bf16.msra.mxu0 0
        %594 = vmatprep.subr.bf16.mxu0 0
        %595 = vmatpush1.bf16.msra.mxu0 0
        %596 = vmatprep.subr.bf16.mxu0 0
        %597 = vmatpush1.bf16.msra.mxu0 0
        %598 = vmatprep.subr.bf16.mxu0 0
        %599 = vmatpush1.bf16.msra.mxu0 0
        %600 = vmatprep.subr.bf16.mxu0 0
        %601 = vmatpush1.bf16.msra.mxu0 0
        %602 = vmatprep.subr.bf16.mxu0 0
        %603 = vmatpush1.bf16.msra.mxu0 0
        %604 = vmatprep.mubr.bf16.mxu0 0
        %605 = vmatmul.mubr.bf16.gmra.mrb[0].mxu0 %v570
        %v606 = vpop.f32.mrb[0].mxu0
        %v607 = vadd.f32 %v555, %v606
        %v608 = vpop.f32.mrb[0].mxu0
        %v609 = vpop.f32.mrb[0].mxu0
        %v610 = vpop.f32.mrb[0].mxu0
        %611 = vdwg.mxu0
        %v612 = vpack.c.bf16 %v607, %v607
        %vm613 = vcmask 519168
        %614 = vst.msk [vmem:[%s323] sm:$0xf] %vm613, %v612
        %s615 = sand.u32 %s225, 1
        %s616 = scalar_lea.sflag [#allocation3], %s615
        %s617 = sand.u32 %s225, 1
        %s618 = smul.addr %s617, 4
        %s619 = scalar_lea.vmem [#allocation2], %s618
        // Predicated region
        $region57: #{tpu_custom_call.1} parent=55 // pred_check
          %p620 = pneg %p235
        $region58: #{tpu_custom_call.1} parent=55 // pred_check_branch
          %622 = sbr.rel (%p620) target = $region60
        $region59: #{tpu_custom_call.1} parent=55 // pred_region
          %s624 = ssub.s32 64, 64
          %625 = vsyncadd %s616, %s624
          %s626 = smul.addr %s23, 64
          %s627 = scalar_lea.hbm %s9, %s626
          %s629 = sshll.u32 %s619, 4
          %s630 = int_to_ptr.vmem [resolvable:$true] %s629
          %632 = dma.vmem_to_hbm [thread:$0]  %s630, 64, %s627, %s616
        $region60: #{tpu_custom_call.1} parent=55 // pred_fallthru
          _
      $region56: #{tpu_custom_call.1} parent=5 // pred_fallthru
        _
      %p633 = scmp.le.s32.totalorder 2, %s18
      // Predicated region
      $region61: #{tpu_custom_call.1} parent=5 // pred_check
        %p634 = pneg %p633
      $region62: #{tpu_custom_call.1} parent=5 // pred_check_branch
        %636 = sbr.rel (%p634) target = $region64
      $region63: #{tpu_custom_call.1} parent=5 // pred_region
        %s637 = ssub.s32 %s18, 2
        // Predicated region
        $region65: #{tpu_custom_call.1} parent=63 // pred_check
          %p638 = pneg %p241
        $region66: #{tpu_custom_call.1} parent=63 // pred_check_branch
          %640 = sbr.rel (%p638) target = $region68
        $region67: #{tpu_custom_call.1} parent=63 // pred_region
          %s641 = sand.u32 %s226, 1
          %s642 = scalar_lea.sflag [#allocation3], %s641
          %s643 = sand.u32 %s226, 1
          %s644 = smul.addr %s643, 4
          %s645 = scalar_lea.vmem [#allocation2], %s644
          %646 = dma.done %s642, 64
        $region68: #{tpu_custom_call.1} parent=63 // pred_fallthru
          _
      $region64: #{tpu_custom_call.1} parent=5 // pred_fallthru
        _
    $region6: #{tpu_custom_call.1} parent=1 // loop_footer
      %s22 = sadd.s32 1, %s18
    $region7: #{tpu_custom_call.1} parent=1 // loop_footer_branch
      %17 = sbr.rel target = $region3
    $region8: #{tpu_custom_call.1} parent=1 // loop_exit
      _
    %647 = vsyncpa [#allocation3], 1
    %s648 = scalar_lea.sflag [#allocation3], 1
    %649 = vsyncpa %s648, 1

</llo_original>
